<compile_context>
chip_gen: v7x
topology: tpu7x:2x2x1
jax: 0.10.0
libtpu: 0.0.40
codegen_flags: <defaults>
</compile_context>

<pallas_src>
import functools

import jax
import jax.numpy as jnp
from jax.experimental import pallas as pl
from jax.experimental.pallas import tpu as pltpu


def _causal_conv2d_kernel(b_ref, w_ref, x_ref, o_ref, *, dilation, H, W):
    """b_ref: (1,) bias in SMEM.  w_ref: (6, H*W) masked weight rows in VMEM.
    x_ref / o_ref: (bB, H*W) VMEM blocks (flattened images, batch on sublanes,
    flattened (h, w) on lanes)."""
    HW = H * W
    x = x_ref[...].astype(jnp.float32)          # (bB, HW)
    w = w_ref[...]                              # (6, HW) f32 — hoisted once

    acc = jnp.full(x.shape, b_ref[0], dtype=jnp.float32)
    for kh in range(2):
        for kw in range(3):
            # tap[i] = x[i + s] along the flattened (h*W + w) axis.  Positions
            # where the tap would read padding (h < dilation for kh==0, w==0
            # for kw==0, w==W-1 for kw==2) — which include every circular
            # wrap-around — are zeroed by the pre-masked weight row, so a
            # plain circular roll is exact.
            s = (kh - 1) * dilation * W + (kw - 1)
            sh = (-s) % HW
            tap = x if sh == 0 else pltpu.roll(x, shift=sh, axis=1)
            t = kh * 3 + kw
            acc = acc + tap * w[t:t + 1, :]      # (1, HW) broadcast over batch
    o_ref[...] = jnp.maximum(acc, 0.0).astype(o_ref.dtype)


def _masked_weight_rows(weight, dilation, H, W):
    """(6, H*W) f32: conv weight per tap, broadcast over flattened image
    positions and zeroed wherever that tap reads the implicit zero padding.
    Tiny (6 * H*W floats); computed in plain JAX outside the kernel."""
    w = weight.reshape(2, 3).astype(jnp.float32)
    idx = jnp.arange(H * W, dtype=jnp.int32)
    row, col = idx // W, idx % W
    rows = []
    for kh in range(2):
        for kw in range(3):
            valid = jnp.full((H * W,), True)
            if kh == 0:                      # tap reads x[h - dilation, .]
                valid = valid & (row >= dilation)
            if kw == 0:                      # tap reads x[., w - 1]
                valid = valid & (col >= 1)
            elif kw == 2:                    # tap reads x[., w + 1]
                valid = valid & (col <= W - 2)
            rows.append(jnp.where(valid, w[kh, kw], 0.0))
    return jnp.stack(rows)                   # (6, H*W)


def _pick_block_b(B, HW, itemsize):
    """Images per grid step: ~1 MiB of input per block (measured ~85% of HBM
    roofline), a multiple of 8 sublanes, and >= 2 grid steps when the batch is
    large enough so both v7x TensorCores get work."""
    target_bytes = 1 << 20
    bB = max(8, (target_bytes // (HW * itemsize)) // 8 * 8)
    if B <= 16:
        return B                             # tiny batch: one full-extent block
    half = -(-B // 2)                        # ceil(B / 2)  -> >= 2 grid steps
    half = -(-half // 8) * 8                 # round up to sublane multiple
    return int(min(bB, half))


def causal_conv2d(x, weight, bias, level=0):
    """x: (B, 1, H, W), weight: (1, 1, 2, 3), bias: (1,).  Returns (B, 1, H, W)."""
    d = 2 ** level                           # dilation == padding_x
    B, C, H, W = x.shape
    assert C == 1, "CausalConv2d has in_channels = out_channels = 1"
    HW = H * W

    xf = x.reshape(B, HW)                    # free reshape -> lane-dense layout
    wrows = _masked_weight_rows(weight, d, H, W)
    b1 = bias.reshape(1).astype(jnp.float32)

    bB = _pick_block_b(B, HW, x.dtype.itemsize)
    nb = pl.cdiv(B, bB)
    Bp = nb * bB
    if Bp != B:                              # ragged tail only: pad batch rows
        xf = jnp.pad(xf, ((0, Bp - B), (0, 0)))

    kernel = functools.partial(_causal_conv2d_kernel, dilation=d, H=H, W=W)

    out = pl.pallas_call(
        kernel,
        out_shape=jax.ShapeDtypeStruct((Bp, HW), x.dtype),
        grid=(nb,),
        in_specs=[
            pl.BlockSpec(memory_space=pltpu.SMEM),           # bias scalar
            pl.BlockSpec((6, HW), lambda b: (0, 0)),          # masked weight rows
            pl.BlockSpec((bB, HW), lambda b: (b, 0)),         # batched images
        ],
        out_specs=pl.BlockSpec((bB, HW), lambda b: (b, 0)),
        compiler_params=pltpu.CompilerParams(
            dimension_semantics=("parallel",),                # megacore-shardable
            vmem_limit_bytes=32 * 1024 * 1024,                # explicit; blocks ~1 MiB
        ),
    )(b1, wrows, xf)

    return out[:B].reshape(B, 1, H, W)


def _reference(x, weight, bias, level):
    """Pure-JAX reference reproducing the PyTorch forward exactly."""
    d = 2 ** level
    y = jax.lax.conv_general_dilated(
        x, weight,
        window_strides=(1, 1),
        padding=((d, d), (1, 1)),
        rhs_dilation=(d, 1),
        dimension_numbers=("NCHW", "OIHW", "NCHW"),
    ) + bias[None, :, None, None]
    y = jnp.maximum(y, 0.0)
    return y[:, :, :-d, :]


if __name__ == "__main__":
    key = jax.random.PRNGKey(0)
    configs = [
        # (B, H, W, level): single-block, multi-block (grid=2), and
        # ragged-tail / higher-dilation paths — all small shapes.
        (2, 16, 16, 1),
        (48, 16, 16, 0),
        (20, 16, 16, 2),
    ]
    for (B, H, W, level) in configs:
        key, kx, kw_, kb = jax.random.split(key, 4)
        x = jax.random.normal(kx, (B, 1, H, W), dtype=jnp.float32)
        bound = 1.0 / jnp.sqrt(1.0 * 2 * 3)   # nn.Conv2d default init range
        weight = jax.random.uniform(kw_, (1, 1, 2, 3), jnp.float32, -bound, bound)
        bias = jax.random.uniform(kb, (1,), jnp.float32, -bound, bound)

        out = jax.block_until_ready(causal_conv2d(x, weight, bias, level=level))
        ref = _reference(x, weight, bias, level)
        assert out.shape == (B, 1, H, W)
        assert jnp.allclose(out, ref, atol=1e-5, rtol=1e-5), (
            f"mismatch vs reference for config {(B, H, W, level)}")

    print("KERNEL_OK")
</pallas_src>

<mosaic_0001>
module attributes {stable_mosaic.version = 11 : i64} {
  func.func @_causal_conv2d_kernel(%arg0: i32, %arg1: memref<1xf32, #tpu.memory_space<smem>>, %arg2: memref<6x256xf32, #tpu.memory_space<vmem>>, %arg3: memref<2x256xf32, #tpu.memory_space<vmem>>, %arg4: memref<2x256xf32, #tpu.memory_space<vmem>>) attributes {dimension_semantics = [#tpu.dimension_semantics<parallel>], iteration_bounds = array<i64: 1>, scalar_prefetch = 0 : i64, scratch_operands = 0 : i64, tpu.core_type = #tpu.core_type<tc>, window_params = [{transform_indices = @transform_0, window_bounds = array<i64: 1>}, {pipeline_mode = #tpu.pipeline_mode<synchronous>, transform_indices = @transform_1, window_bounds = array<i64: 6, 256>}, {transform_indices = @transform_2, window_bounds = array<i64: 2, 256>}, {transform_indices = @transform_3, window_bounds = array<i64: 2, 256>}]} {
    %c0 = arith.constant 0 : index
    %c0_0 = arith.constant 0 : index
    %0 = vector.load %arg3[%c0, %c0_0] : memref<2x256xf32, #tpu.memory_space<vmem>>, vector<2x256xf32>
    %c0_1 = arith.constant 0 : index
    %c0_2 = arith.constant 0 : index
    %1 = vector.load %arg2[%c0_1, %c0_2] : memref<6x256xf32, #tpu.memory_space<vmem>>, vector<6x256xf32>
    %c0_3 = arith.constant 0 : index
    %2 = memref.load %arg1[%c0_3] : memref<1xf32, #tpu.memory_space<smem>>
    %3 = vector.broadcast %2 : f32 to vector<2x256xf32>
    %c33_i32 = arith.constant 33 : i32
    %4 = tpu.dynamic_rotate %0 by %c33_i32 dim 1 : vector<2x256xf32>, i32 -> vector<2x256xf32>
    %5 = vector.extract_strided_slice %1 {offsets = [0, 0], sizes = [1, 256], strides = [1, 1]} : vector<6x256xf32> to vector<1x256xf32>
    %6 = vector.broadcast %5 : vector<1x256xf32> to vector<2x256xf32>
    %7 = arith.mulf %4, %6 : vector<2x256xf32>
    %8 = arith.addf %3, %7 : vector<2x256xf32>
    %c32_i32 = arith.constant 32 : i32
    %9 = tpu.dynamic_rotate %0 by %c32_i32 dim 1 : vector<2x256xf32>, i32 -> vector<2x256xf32>
    %10 = vector.extract_strided_slice %1 {offsets = [1, 0], sizes = [1, 256], strides = [1, 1]} : vector<6x256xf32> to vector<1x256xf32>
    %11 = vector.broadcast %10 : vector<1x256xf32> to vector<2x256xf32>
    %12 = arith.mulf %9, %11 : vector<2x256xf32>
    %13 = arith.addf %8, %12 : vector<2x256xf32>
    %c31_i32 = arith.constant 31 : i32
    %14 = tpu.dynamic_rotate %0 by %c31_i32 dim 1 : vector<2x256xf32>, i32 -> vector<2x256xf32>
    %15 = vector.extract_strided_slice %1 {offsets = [2, 0], sizes = [1, 256], strides = [1, 1]} : vector<6x256xf32> to vector<1x256xf32>
    %16 = vector.broadcast %15 : vector<1x256xf32> to vector<2x256xf32>
    %17 = arith.mulf %14, %16 : vector<2x256xf32>
    %18 = arith.addf %13, %17 : vector<2x256xf32>
    %c1_i32 = arith.constant 1 : i32
    %19 = tpu.dynamic_rotate %0 by %c1_i32 dim 1 : vector<2x256xf32>, i32 -> vector<2x256xf32>
    %20 = vector.extract_strided_slice %1 {offsets = [3, 0], sizes = [1, 256], strides = [1, 1]} : vector<6x256xf32> to vector<1x256xf32>
    %21 = vector.broadcast %20 : vector<1x256xf32> to vector<2x256xf32>
    %22 = arith.mulf %19, %21 : vector<2x256xf32>
    %23 = arith.addf %18, %22 : vector<2x256xf32>
    %24 = vector.extract_strided_slice %1 {offsets = [4, 0], sizes = [1, 256], strides = [1, 1]} : vector<6x256xf32> to vector<1x256xf32>
    %25 = vector.broadcast %24 : vector<1x256xf32> to vector<2x256xf32>
    %26 = arith.mulf %0, %25 : vector<2x256xf32>
    %27 = arith.addf %23, %26 : vector<2x256xf32>
    %c255_i32 = arith.constant 255 : i32
    %28 = tpu.dynamic_rotate %0 by %c255_i32 dim 1 : vector<2x256xf32>, i32 -> vector<2x256xf32>
    %29 = vector.extract_strided_slice %1 {offsets = [5, 0], sizes = [1, 256], strides = [1, 1]} : vector<6x256xf32> to vector<1x256xf32>
    %30 = vector.broadcast %29 : vector<1x256xf32> to vector<2x256xf32>
    %31 = arith.mulf %28, %30 : vector<2x256xf32>
    %32 = arith.addf %27, %31 : vector<2x256xf32>
    %cst = arith.constant 0.000000e+00 : f32
    %33 = vector.broadcast %cst : f32 to vector<2x256xf32>
    %34 = arith.maximumf %32, %33 : vector<2x256xf32>
    %c0_4 = arith.constant 0 : index
    %c0_5 = arith.constant 0 : index
    %35 = vector.load %arg4[%c0_4, %c0_5] : memref<2x256xf32, #tpu.memory_space<vmem>>, vector<2x256xf32>
    tpu.vector_store %arg4[%c0_4, %c0_5], %34 {strides = array<i32>} : memref<2x256xf32, #tpu.memory_space<vmem>>, vector<2x256xf32>,
    return
  }
  func.func @transform_0(%arg0: i32) -> i32 {
    %c0_i32 = arith.constant 0 : i32
    %c0_i32_0 = arith.constant 0 : i32
    return %c0_i32 : i32
  }
  func.func @transform_1(%arg0: i32) -> (i32, i32) {
    %c0_i32 = arith.constant 0 : i32
    %c0_i32_0 = arith.constant 0 : i32
    %c0_i32_1 = arith.constant 0 : i32
    return %c0_i32, %c0_i32_0 : i32, i32
  }
  func.func @transform_2(%arg0: i32) -> (i32, i32) {
    %c0_i32 = arith.constant 0 : i32
    %c0_i32_0 = arith.constant 0 : i32
    return %arg0, %c0_i32 : i32, i32
  }
  func.func @transform_3(%arg0: i32) -> (i32, i32) {
    %c0_i32 = arith.constant 0 : i32
    %c0_i32_0 = arith.constant 0 : i32
    return %arg0, %c0_i32 : i32, i32
  }
}

</mosaic_0001>

<llo_original>
// kernel: tpu_custom_call.1
$region0: #{tpu_custom_call.1}
  #allocation0 [shape = 'u32[]', space=smem, size = 0x4, offset = 0x4, fixed_abs, tag = 'smem constant byte address 0x4 - core index']
  #allocation1 [shape = 'u32[144,128]{1,0:T(1,128)}', space=vmem, size = 0x12000, scoped, tag = 'internal scratch']
  #allocation2 [shape = 'f32[1]{0:T(128)S(6)}', space=smem, size = 0x200, scoped, tag = 'scoped memory for tpu_custom_call.1']
  %s0 = inlined_call_operand.<no memory space> [shape: f32[1], index: 0, kind: input, shape index: {}]
  %s1 = inlined_call_operand.hbm [shape: f32[6,256], index: 1, kind: input, shape index: {}]
  %s2 = inlined_call_operand.vmem [shape: f32[2,256], index: 2, kind: input, shape index: {}]
  %s3 = inlined_call_operand.hbm [shape: f32[2,256], index: 3, kind: output, shape index: {}]
  %s4 = sld [smem:[#allocation0]]
  $region26: #{tpu_custom_call.1} parent=0
    _
  %s6 = ssub.s32 1, %s4
  %s7 = scalar_select 0, %s6, %s4
  %8 = sst [smem:[#allocation2]] %s0
  $region1: #{tpu_custom_call.1} parent=0
    #allocation3 [shape = 'u8[8192]{0}', space=vmem, size = 0x2000, scoped, tag = 'input window, operand 1, single buffered']
    #allocation4 [shape = 's32[1]{0}', space=sflag, size = 0x4, scoped, tag = 'scoped memory for tpu_custom_call.1']
    #allocation5 [shape = 's32[1]{0}', space=sflag, size = 0x4, scoped, tag = 'scoped memory for tpu_custom_call.1']
    #allocation6 [shape = 'u8[2048]{0}', space=vmem, size = 0x800, scoped, tag = 'output window, operand 0, single buffered']
    %9 = vsyncpa [#allocation4], 0
    %10 = vsyncpa [#allocation5], 0
    // Predicated region
    $region2: #{tpu_custom_call.1} parent=1 // pred_check
      _
    $region3: #{tpu_custom_call.1} parent=1 // pred_check_branch
      %12 = sbr.rel (0) target = $region5
    $region4: #{tpu_custom_call.1} parent=1 // pred_region
      _
    $region5: #{tpu_custom_call.1} parent=1 // pred_fallthru
      _
    // Predicated region
    $region6: #{tpu_custom_call.1} parent=1 // pred_check
      _
    $region7: #{tpu_custom_call.1} parent=1 // pred_check_branch
      %14 = sbr.rel (0) target = $region9
    $region8: #{tpu_custom_call.1} parent=1 // pred_region
      %s16 = ssub.s32 256, 256
      %17 = vsyncadd [#allocation4], %s16
      %s19 = sshll.u32 [#allocation3], 4
      %s20 = int_to_ptr.vmem [resolvable:$true] %s19
      %22 = dma.hbm_to_vmem [thread:$0]  %s1, 256, %s20, [#allocation4]
    $region9: #{tpu_custom_call.1} parent=1 // pred_fallthru
      _
    // Predicated region
    $region10: #{tpu_custom_call.1} parent=1 // pred_check
      _
    $region11: #{tpu_custom_call.1} parent=1 // pred_check_branch
      %24 = sbr.rel (0) target = $region13
    $region12: #{tpu_custom_call.1} parent=1 // pred_region
      _
    $region13: #{tpu_custom_call.1} parent=1 // pred_fallthru
      _
    // Predicated region
    $region14: #{tpu_custom_call.1} parent=1 // pred_check
      _
    $region15: #{tpu_custom_call.1} parent=1 // pred_check_branch
      %26 = sbr.rel (0) target = $region17
    $region16: #{tpu_custom_call.1} parent=1 // pred_region
      %27 = dma.done [#allocation4], 256
    $region17: #{tpu_custom_call.1} parent=1 // pred_fallthru
      _
    %v28 = vld [vmem:[%s2] sm:$0xf]
    %v29 = vld [vmem:[#allocation3] sm:$0x3f]
    %v30 = vld [vmem:[#allocation3 + $0x8] sm:$0x3f]
    %s31 = sld [smem:[#allocation2]]
    %v32 = vstv %s31
    %v35 = vunpack.c.l.s4 1983009808
    %v36 = vunpack.c.0.s8 %v35
    %v37 = vlaneseq
    %v38 = vshrl.u32 %v37, 7
    %v39 = vsub.s32 %v36, %v38
    %v40 = vrot.slane %v28, %v39
    %v41 = vcombine.high %v40, %v40
    %44 = vrot.lane.b32.xlu0 %v40, 33
    %v45 = vpop.permute.xlu0 %44
    %46 = vrot.lane.b32.xlu0 %v41, 33
    %v47 = vpop.permute.xlu0 %46
    %v48 = vlaneseq
    %v49 = vand.u32 %v48, 127
    %vm50 = vcmp.lt.s32.totalorder %v49, 33
    %v51 = vsel %vm50, %v45, %v47
    %v52 = vsel %vm50, %v47, %v45
    %v53 = vlaneseq
    %v54 = vshrl.u32 %v53, 7
    %v55 = vsub.s32 0, %v54
    %v56 = vrot.slane %v29, %v55
    %v57 = vlaneseq
    %v58 = vshrl.u32 %v57, 7
    %v59 = vsub.s32 0, %v58
    %v60 = vrot.slane %v30, %v59
    %v61 = vmul.f32 %v52, %v56
    %v62 = vmul.f32 %v51, %v60
    %v63 = vadd.f32 %v32, %v61
    %v64 = vadd.f32 %v32, %v62
    %65 = vrot.lane.b32.xlu0 %v40, 32
    %v66 = vpop.permute.xlu0 %65
    %67 = vrot.lane.b32.xlu0 %v41, 32
    %v68 = vpop.permute.xlu0 %67
    %vm69 = vcmp.lt.s32.totalorder %v49, 32
    %v70 = vsel %vm69, %v66, %v68
    %v71 = vsel %vm69, %v68, %v66
    %v72 = vlaneseq
    %v73 = vshrl.u32 %v72, 7
    %v74 = vsub.s32 1, %v73
    %v75 = vrot.slane %v29, %v74
    %v76 = vlaneseq
    %v77 = vshrl.u32 %v76, 7
    %v78 = vsub.s32 1, %v77
    %v79 = vrot.slane %v30, %v78
    %v80 = vmul.f32 %v71, %v75
    %v81 = vmul.f32 %v70, %v79
    %v82 = vadd.f32 %v63, %v80
    %v83 = vadd.f32 %v64, %v81
    %84 = vrot.lane.b32.xlu0 %v40, 31
    %v85 = vpop.permute.xlu0 %84
    %86 = vrot.lane.b32.xlu0 %v41, 31
    %v87 = vpop.permute.xlu0 %86
    %vm88 = vcmp.lt.s32.totalorder %v49, 31
    %v89 = vsel %vm88, %v85, %v87
    %v90 = vsel %vm88, %v87, %v85
    %v91 = vlaneseq
    %v92 = vshrl.u32 %v91, 7
    %v93 = vsub.s32 2, %v92
    %v94 = vrot.slane %v29, %v93
    %v95 = vlaneseq
    %v96 = vshrl.u32 %v95, 7
    %v97 = vsub.s32 2, %v96
    %v98 = vrot.slane %v30, %v97
    %v99 = vmul.f32 %v90, %v94
    %v100 = vmul.f32 %v89, %v98
    %v101 = vadd.f32 %v82, %v99
    %v102 = vadd.f32 %v83, %v100
    %103 = vrot.lane.b32.xlu0 %v40, 1
    %v104 = vpop.permute.xlu0 %103
    %105 = vrot.lane.b32.xlu0 %v41, 1
    %v106 = vpop.permute.xlu0 %105
    %vm107 = vcmp.lt.s32.totalorder %v49, 1
    %v108 = vsel %vm107, %v104, %v106
    %v109 = vsel %vm107, %v106, %v104
    %v110 = vlaneseq
    %v111 = vshrl.u32 %v110, 7
    %v112 = vsub.s32 3, %v111
    %v113 = vrot.slane %v29, %v112
    %v114 = vlaneseq
    %v115 = vshrl.u32 %v114, 7
    %v116 = vsub.s32 3, %v115
    %v117 = vrot.slane %v30, %v116
    %v118 = vmul.f32 %v109, %v113
    %v119 = vmul.f32 %v108, %v117
    %v120 = vadd.f32 %v101, %v118
    %v121 = vadd.f32 %v102, %v119
    %v122 = vlaneseq
    %v123 = vshrl.u32 %v122, 7
    %v124 = vsub.s32 4, %v123
    %v125 = vrot.slane %v29, %v124
    %v126 = vlaneseq
    %v127 = vshrl.u32 %v126, 7
    %v128 = vsub.s32 4, %v127
    %v129 = vrot.slane %v30, %v128
    %v132 = vcombine.low %v125, %v129
    %v134 = vunpack.c.l.s4 1983009808
    %v135 = vunpack.c.0.s8 %v134
    %v136 = vlaneseq
    %v137 = vshrl.u32 %v136, 7
    %v138 = vsub.s32 %v135, %v137
    %v139 = vrot.slane %v132, %v138
    %v141 = vmul.f32 %v28, %v139
    %v144 = vunpack.c.l.s4 1983009808
    %v145 = vunpack.c.0.s8 %v144
    %v146 = vlaneseq
    %v147 = vshrl.u32 %v146, 7
    %v148 = vsub.s32 %v145, %v147
    %v149 = vrot.slane %v141, %v148
    %v150 = vcombine.high %v149, %v149
    %v153 = vadd.f32 %v120, %v149
    %v154 = vadd.f32 %v121, %v150
    %155 = vrot.lane.b32.xlu0 %v40, 127
    %v156 = vpop.permute.xlu0 %155
    %157 = vrot.lane.b32.xlu0 %v41, 127
    %v158 = vpop.permute.xlu0 %157
    %vm159 = vcmp.lt.s32.totalorder %v49, 127
    %v160 = vsel %vm159, %v156, %v158
    %v161 = vsel %vm159, %v158, %v156
    %v162 = vlaneseq
    %v163 = vshrl.u32 %v162, 7
    %v164 = vsub.s32 5, %v163
    %v165 = vrot.slane %v29, %v164
    %v166 = vlaneseq
    %v167 = vshrl.u32 %v166, 7
    %v168 = vsub.s32 5, %v167
    %v169 = vrot.slane %v30, %v168
    %v170 = vmul.f32 %v160, %v165
    %v171 = vmul.f32 %v161, %v169
    %v172 = vadd.f32 %v153, %v170
    %v173 = vadd.f32 %v154, %v171
    %v174 = vmax.f32 %v172, 0.0
    %v175 = vmax.f32 %v173, 0.0
    %v178 = vcombine.low %v174, %v175
    %v180 = vunpack.c.l.s4 1983009808
    %v181 = vunpack.c.0.s8 %v180
    %v182 = vlaneseq
    %v183 = vshrl.u32 %v182, 7
    %v184 = vsub.s32 %v181, %v183
    %v185 = vrot.slane %v178, %v184
    %187 = vst [vmem:[#allocation6] sm:$0xf] %v185
    // Predicated region
    $region18: #{tpu_custom_call.1} parent=1 // pred_check
      _
    $region19: #{tpu_custom_call.1} parent=1 // pred_check_branch
      %189 = sbr.rel (0) target = $region21
    $region20: #{tpu_custom_call.1} parent=1 // pred_region
      %s191 = ssub.s32 64, 64
      %192 = vsyncadd [#allocation5], %s191
      %s194 = sshll.u32 [#allocation6], 4
      %s195 = int_to_ptr.vmem [resolvable:$true] %s194
      %197 = dma.vmem_to_hbm [thread:$0]  %s195, 64, %s3, [#allocation5]
    $region21: #{tpu_custom_call.1} parent=1 // pred_fallthru
      _
    // Predicated region
    $region22: #{tpu_custom_call.1} parent=1 // pred_check
      _
    $region23: #{tpu_custom_call.1} parent=1 // pred_check_branch
      %199 = sbr.rel (0) target = $region25
    $region24: #{tpu_custom_call.1} parent=1 // pred_region
      %200 = dma.done [#allocation5], 64
    $region25: #{tpu_custom_call.1} parent=1 // pred_fallthru
      _
    %201 = vsyncpa [#allocation4], 1
    %202 = vsyncpa [#allocation5], 1

</llo_original>
